<compile_context>
chip_gen: v7x
topology: tpu7x:2x2x1
jax: 0.10.0
libtpu: 0.0.40
codegen_flags: <defaults>
</compile_context>

<pallas_src>
import numpy as np
import jax
import jax.numpy as jnp
from jax import lax
from jax.experimental import pallas as pl
from jax.experimental.pallas import tpu as pltpu

_EPS = 1e-12
_PI = float(np.pi)
_LANES = 128
_SUBLANES = 8
_NCORES = 2                      # leading "parallel" grid axis (v7x has 2 TCs)
_DEFAULT_BLOCK_BYTES = 2 * 1024 * 1024   # ~2 MiB per input block

# Abramowitz & Stegun 4.4.46: acos(x) = sqrt(1-x) * poly(x) for x in [0, 1],
# absolute error <= 2e-8.
_ACOS_COEFFS = (
    1.5707963050, -0.2145988016, 0.0889789874, -0.0501743046,
    0.0308918810, -0.0170881256, 0.0066700901, -0.0012624911,
)


def _acos(x):
    """acos(x) for |x| <= 1; |x| > 1 yields NaN (same as torch.acos)."""
    ax = jnp.abs(x)
    p = _ACOS_COEFFS[7]
    for k in range(6, -1, -1):
        p = p * ax + _ACOS_COEFFS[k]
    pos = jnp.sqrt(1.0 - ax) * p          # NaN when |x| > 1 (sqrt of negative)
    return jnp.where(x < 0.0, _PI - pos, pos)


def _accumulate(out_ref, sam, tile_r):
    """Add per-pixel angles (tile_r, 128) into the resident (8,128) output block."""
    if tile_r % _SUBLANES == 0:
        # vreg-aligned reshape + axis-0 sum: pure full-vreg VPU adds.
        out_ref[...] += jnp.sum(
            sam.reshape(tile_r // _SUBLANES, _SUBLANES, _LANES), axis=0)
    else:
        # Tiny single-block case (tile_r == R < a few rows): one sublane reduce.
        out_ref[0:1, :] += jnp.sum(sam, axis=0, keepdims=True)


def _make_sam_kernel(n_pix, tile_r, n_tiles, tiles_per_core):
    last_tile = n_tiles - 1

    def kernel(x_ref, y_ref, out_ref):
        c = pl.program_id(0)          # core-split axis ("parallel")
        i = pl.program_id(1)          # pixel-tile axis ("arbitrary", accumulator)
        t = c * tiles_per_core + i    # global pixel-tile index (may overflow last_tile)

        @pl.when(i == 0)
        def _init():
            out_ref[...] = jnp.zeros_like(out_ref)

        x = x_ref[...].astype(jnp.float32)    # (C, tile_r, 128), cast in-kernel
        y = y_ref[...].astype(jnp.float32)

        nom = jnp.sum(x * y, axis=0)          # (tile_r, 128)
        n1 = jnp.sum(x * x, axis=0)
        n2 = jnp.sum(y * y, axis=0)
        den = jnp.maximum(jnp.sqrt(n1), _EPS) * jnp.maximum(jnp.sqrt(n2), _EPS)
        sam = _acos(nom / den)
        sam = jnp.where(sam != sam, 0.0, sam)  # torch: sam[sam != sam] = 0

        @pl.when(t < last_tile)
        def _interior():                       # every lane valid: no mask work
            _accumulate(out_ref, sam, tile_r)

        @pl.when(t >= last_tile)
        def _edge():                           # last real tile (ragged/padded) or
            row = lax.broadcasted_iota(jnp.int32, sam.shape, 0)   # overflow duplicate
            lane = lax.broadcasted_iota(jnp.int32, sam.shape, 1)
            pix = (t * tile_r + row) * _LANES + lane
            _accumulate(out_ref, jnp.where(pix < n_pix, sam, 0.0), tile_r)

    return kernel


def _choose_tile_r(R, C, itemsize, block_bytes):
    """Rows of 128 pixels per block: ~block_bytes per input block, multiple of 32."""
    tr = max(_SUBLANES, block_bytes // (C * _LANES * itemsize))
    tr = max(32, (tr // 32) * 32)
    if tr >= R:
        return R           # one block spans the whole (padded) pixel axis
    return tr


def sam_pallas(im_true, im_fake, block_bytes=_DEFAULT_BLOCK_BYTES):
    """SAM(im_true, im_fake) -> scalar (degrees), matching the PyTorch SAM module."""
    if im_true.ndim == 4 and im_true.shape[0] == 1:      # torch .squeeze(0)
        im_true = jnp.squeeze(im_true, axis=0)
        im_fake = jnp.squeeze(im_fake, axis=0)
    C, H, W = im_true.shape
    n_pix = H * W
    R = pl.cdiv(n_pix, _LANES)
    padded = R * _LANES

    x = im_true.reshape(C, n_pix)        # native dtype; cast happens in-kernel
    y = im_fake.reshape(C, n_pix)
    if padded != n_pix:
        # <128-pixel tail pad, only needed to form the lane-dense (C,R,128) view;
        # typical image sizes (H*W % 128 == 0) take the free-reshape path.
        x = jnp.pad(x, ((0, 0), (0, padded - n_pix)))
        y = jnp.pad(y, ((0, 0), (0, padded - n_pix)))
    x = x.reshape(C, R, _LANES)          # contiguous -> free
    y = y.reshape(C, R, _LANES)

    itemsize = np.dtype(im_true.dtype).itemsize
    tile_r = _choose_tile_r(R, C, itemsize, block_bytes)
    n_tiles = pl.cdiv(R, tile_r)
    ncores = min(_NCORES, n_tiles)
    tiles_per_core = pl.cdiv(n_tiles, ncores)

    def in_map(c, i):
        # Clamp overflow tiles of the last core onto a valid block; their
        # contribution is fully masked out in the kernel.
        return (0, jnp.minimum(c * tiles_per_core + i, n_tiles - 1), 0)

    kernel = _make_sam_kernel(n_pix, tile_r, n_tiles, tiles_per_core)
    partials = pl.pallas_call(
        kernel,
        out_shape=jax.ShapeDtypeStruct((ncores, _SUBLANES, _LANES), jnp.float32),
        grid_spec=pltpu.PrefetchScalarGridSpec(
            num_scalar_prefetch=0,
            grid=(ncores, tiles_per_core),
            in_specs=[
                pl.BlockSpec((C, tile_r, _LANES), in_map),
                pl.BlockSpec((C, tile_r, _LANES), in_map),
            ],
            out_specs=pl.BlockSpec((None, _SUBLANES, _LANES),
                                   lambda c, i: (c, 0, 0)),
        ),
        compiler_params=pltpu.CompilerParams(
            dimension_semantics=("parallel", "arbitrary"),
            vmem_limit_bytes=48 * 1024 * 1024),
    )(x, y)

    return jnp.sum(partials) / n_pix / _PI * 180.0


def _sam_reference(im_true, im_fake):
    """Pure-JAX reference mirroring the PyTorch module, for a numerical check."""
    t = jnp.squeeze(im_true, axis=0).astype(jnp.float32)
    f = jnp.squeeze(im_fake, axis=0).astype(jnp.float32)
    C, H, W = t.shape
    t = t.reshape(C, H * W)
    f = f.reshape(C, H * W)
    nom = jnp.sum(t * f, axis=0)
    den = (jnp.maximum(jnp.linalg.norm(t, axis=0), _EPS) *
           jnp.maximum(jnp.linalg.norm(f, axis=0), _EPS))
    sam = jnp.arccos(nom / den)
    sam = jnp.where(jnp.isnan(sam), 0.0, sam)
    return jnp.sum(sam) / (H * W) / _PI * 180.0


def _check(key, shape, **kwargs):
    k1, k2 = jax.random.split(key)
    im_true = jax.random.uniform(k1, shape, dtype=jnp.float32)
    im_fake = jnp.clip(
        im_true + 0.05 * jax.random.normal(k2, shape, dtype=jnp.float32), 0.0, 1.0)
    out = jax.block_until_ready(sam_pallas(im_true, im_fake, **kwargs))
    ref = jax.block_until_ready(_sam_reference(im_true, im_fake))
    assert np.allclose(np.asarray(out), np.asarray(ref), rtol=1e-4, atol=1e-4), \
        (shape, out, ref)


if __name__ == "__main__":
    key = jax.random.PRNGKey(0)
    k1, k2, k3 = jax.random.split(key, 3)
    # 1) basic small case (module implies batch == 1 via squeeze(0))
    _check(k1, (1, 4, 16, 16))
    # 2) H*W not a multiple of 128: exercises the tail-pad + lane-mask path
    _check(k2, (1, 3, 19, 13))
    # 3) multi-tile + dual-core split (block size forced small to exercise the
    #    "parallel" core axis, interior/edge gating and overflow-tile clamp)
    _check(k3, (1, 4, 96, 128), block_bytes=64 * 1024)

    print("KERNEL_OK")
</pallas_src>

<mosaic_0001>
module attributes {stable_mosaic.version = 11 : i64} {
  func.func @kernel(%arg0: i32, %arg1: i32, %arg2: memref<4x2x128xf32, #tpu.memory_space<vmem>>, %arg3: memref<4x2x128xf32, #tpu.memory_space<vmem>>, %arg4: memref<1x8x128xf32, #tpu.memory_space<vmem>>) attributes {dimension_semantics = [#tpu.dimension_semantics<parallel>, #tpu.dimension_semantics<arbitrary>], iteration_bounds = array<i64: 1, 1>, scalar_prefetch = 0 : i64, scratch_operands = 0 : i64, tpu.core_type = #tpu.core_type<tc>, window_params = [{transform_indices = @transform_0, window_bounds = array<i64: 4, 2, 128>}, {transform_indices = @transform_1, window_bounds = array<i64: 4, 2, 128>}, {transform_indices = @transform_2, window_bounds = array<i64: 1, 8, 128>}]} {
    %c1_i32 = arith.constant 1 : i32
    %0 = arith.muli %arg0, %c1_i32 : i32
    %1 = arith.addi %0, %arg1 : i32
    %c0_i32 = arith.constant 0 : i32
    %2 = arith.cmpi eq, %arg1, %c0_i32 : i32
    %3 = arith.extui %2 : i1 to i32
    %c0_i32_0 = arith.constant 0 : i32
    %4 = arith.cmpi ne, %3, %c0_i32_0 : i32
    scf.if %4 {
      %cst_26 = arith.constant 0.000000e+00 : f32
      %62 = vector.broadcast %cst_26 : f32 to vector<8x128xf32>
      %c0_27 = arith.constant 0 : index
      %c0_28 = arith.constant 0 : index
      %c0_29 = arith.constant 0 : index
      %63 = vector.load %arg4[%c0_27, %c0_28, %c0_29] : memref<1x8x128xf32, #tpu.memory_space<vmem>>, vector<1x8x128xf32>
      %64 = vector.shape_cast %63 : vector<1x8x128xf32> to vector<8x128xf32>
      %65 = vector.shape_cast %62 : vector<8x128xf32> to vector<1x8x128xf32>
      tpu.vector_store %arg4[%c0_27, %c0_28, %c0_29], %65 {strides = array<i32>} : memref<1x8x128xf32, #tpu.memory_space<vmem>>, vector<1x8x128xf32>,
    } else {
    }
    %c0 = arith.constant 0 : index
    %c0_1 = arith.constant 0 : index
    %c0_2 = arith.constant 0 : index
    %5 = vector.load %arg2[%c0, %c0_1, %c0_2] : memref<4x2x128xf32, #tpu.memory_space<vmem>>, vector<4x2x128xf32>
    %c0_3 = arith.constant 0 : index
    %c0_4 = arith.constant 0 : index
    %c0_5 = arith.constant 0 : index
    %6 = vector.load %arg3[%c0_3, %c0_4, %c0_5] : memref<4x2x128xf32, #tpu.memory_space<vmem>>, vector<4x2x128xf32>
    %7 = arith.mulf %5, %6 : vector<4x2x128xf32>
    %cst = arith.constant dense<0.000000e+00> : vector<2x128xf32>
    %8 = vector.multi_reduction <add>, %7, %cst [0] : vector<4x2x128xf32> to vector<2x128xf32>
    %9 = arith.mulf %5, %5 : vector<4x2x128xf32>
    %cst_6 = arith.constant dense<0.000000e+00> : vector<2x128xf32>
    %10 = vector.multi_reduction <add>, %9, %cst_6 [0] : vector<4x2x128xf32> to vector<2x128xf32>
    %11 = arith.mulf %6, %6 : vector<4x2x128xf32>
    %cst_7 = arith.constant dense<0.000000e+00> : vector<2x128xf32>
    %12 = vector.multi_reduction <add>, %11, %cst_7 [0] : vector<4x2x128xf32> to vector<2x128xf32>
    %13 = math.sqrt %10 : vector<2x128xf32>
    %cst_8 = arith.constant 9.99999996E-13 : f32
    %14 = vector.broadcast %cst_8 : f32 to vector<2x128xf32>
    %15 = arith.maximumf %13, %14 : vector<2x128xf32>
    %16 = math.sqrt %12 : vector<2x128xf32>
    %cst_9 = arith.constant 9.99999996E-13 : f32
    %17 = vector.broadcast %cst_9 : f32 to vector<2x128xf32>
    %18 = arith.maximumf %16, %17 : vector<2x128xf32>
    %19 = arith.mulf %15, %18 : vector<2x128xf32>
    %20 = arith.divf %8, %19 : vector<2x128xf32>
    %21 = math.absf %20 : vector<2x128xf32>
    %cst_10 = arith.constant -0.0012624911 : f32
    %22 = vector.broadcast %cst_10 : f32 to vector<2x128xf32>
    %23 = arith.mulf %22, %21 : vector<2x128xf32>
    %cst_11 = arith.constant 6.670090e-03 : f32
    %24 = vector.broadcast %cst_11 : f32 to vector<2x128xf32>
    %25 = arith.addf %23, %24 : vector<2x128xf32>
    %26 = arith.mulf %25, %21 : vector<2x128xf32>
    %cst_12 = arith.constant -0.0170881264 : f32
    %27 = vector.broadcast %cst_12 : f32 to vector<2x128xf32>
    %28 = arith.addf %26, %27 : vector<2x128xf32>
    %29 = arith.mulf %28, %21 : vector<2x128xf32>
    %cst_13 = arith.constant 0.0308918804 : f32
    %30 = vector.broadcast %cst_13 : f32 to vector<2x128xf32>
    %31 = arith.addf %29, %30 : vector<2x128xf32>
    %32 = arith.mulf %31, %21 : vector<2x128xf32>
    %cst_14 = arith.constant -0.0501743034 : f32
    %33 = vector.broadcast %cst_14 : f32 to vector<2x128xf32>
    %34 = arith.addf %32, %33 : vector<2x128xf32>
    %35 = arith.mulf %34, %21 : vector<2x128xf32>
    %cst_15 = arith.constant 0.0889789909 : f32
    %36 = vector.broadcast %cst_15 : f32 to vector<2x128xf32>
    %37 = arith.addf %35, %36 : vector<2x128xf32>
    %38 = arith.mulf %37, %21 : vector<2x128xf32>
    %cst_16 = arith.constant -0.214598805 : f32
    %39 = vector.broadcast %cst_16 : f32 to vector<2x128xf32>
    %40 = arith.addf %38, %39 : vector<2x128xf32>
    %41 = arith.mulf %40, %21 : vector<2x128xf32>
    %cst_17 = arith.constant 1.57079625 : f32
    %42 = vector.broadcast %cst_17 : f32 to vector<2x128xf32>
    %43 = arith.addf %41, %42 : vector<2x128xf32>
    %cst_18 = arith.constant 1.000000e+00 : f32
    %44 = vector.broadcast %cst_18 : f32 to vector<2x128xf32>
    %45 = arith.subf %44, %21 : vector<2x128xf32>
    %46 = math.sqrt %45 : vector<2x128xf32>
    %47 = arith.mulf %46, %43 : vector<2x128xf32>
    %cst_19 = arith.constant 0.000000e+00 : f32
    %48 = vector.broadcast %cst_19 : f32 to vector<2x128xf32>
    %49 = arith.cmpf olt, %20, %48 : vector<2x128xf32>
    %cst_20 = arith.constant 3.14159274 : f32
    %50 = vector.broadcast %cst_20 : f32 to vector<2x128xf32>
    %51 = arith.subf %50, %47 : vector<2x128xf32>
    %52 = arith.select %49, %51, %47 : vector<2x128xi1>, vector<2x128xf32>
    %53 = arith.cmpf one, %52, %52 : vector<2x128xf32>
    %cst_21 = arith.constant 0.000000e+00 : f32
    %54 = vector.broadcast %cst_21 : f32 to vector<2x128xf32>
    %55 = arith.select %53, %54, %52 : vector<2x128xi1>, vector<2x128xf32>
    %c0_i32_22 = arith.constant 0 : i32
    %56 = arith.cmpi slt, %1, %c0_i32_22 : i32
    %57 = arith.extui %56 : i1 to i32
    %c0_i32_23 = arith.constant 0 : i32
    %58 = arith.cmpi ne, %57, %c0_i32_23 : i32
    scf.if %58 {
      %c0_26 = arith.constant 0 : index
      %c0_27 = arith.constant 0 : index
      %c0_28 = arith.constant 0 : index
      %62 = vector.load %arg4[%c0_26, %c0_27, %c0_28] : memref<1x8x128xf32, #tpu.memory_space<vmem>>, vector<1x1x128xf32>
      %63 = vector.shape_cast %62 : vector<1x1x128xf32> to vector<1x128xf32>
      %cst_29 = arith.constant dense<0.000000e+00> : vector<128xf32>
      %64 = vector.multi_reduction <add>, %55, %cst_29 [0] : vector<2x128xf32> to vector<128xf32>
      %65 = vector.shape_cast %64 : vector<128xf32> to vector<1x128xf32>
      %66 = arith.addf %63, %65 : vector<1x128xf32>
      %c0_30 = arith.constant 0 : index
      %c0_31 = arith.constant 0 : index
      %c0_32 = arith.constant 0 : index
      %67 = vector.load %arg4[%c0_30, %c0_31, %c0_32] : memref<1x8x128xf32, #tpu.memory_space<vmem>>, vector<1x1x128xf32>
      %68 = vector.shape_cast %67 : vector<1x1x128xf32> to vector<1x128xf32>
      %69 = vector.shape_cast %66 : vector<1x128xf32> to vector<1x1x128xf32>
      tpu.vector_store %arg4[%c0_30, %c0_31, %c0_32], %69 {strides = array<i32>} : memref<1x8x128xf32, #tpu.memory_space<vmem>>, vector<1x1x128xf32>,
    } else {
    }
    %c0_i32_24 = arith.constant 0 : i32
    %59 = arith.cmpi sge, %1, %c0_i32_24 : i32
    %60 = arith.extui %59 : i1 to i32
    %c0_i32_25 = arith.constant 0 : i32
    %61 = arith.cmpi ne, %60, %c0_i32_25 : i32
    scf.if %61 {
      %62 = tpu.iota {dimensions = array<i32: 0>} : vector<2x128xi32>
      %63 = tpu.iota {dimensions = array<i32: 1>} : vector<2x128xi32>
      %c2_i32 = arith.constant 2 : i32
      %64 = arith.muli %1, %c2_i32 : i32
      %65 = vector.broadcast %64 : i32 to vector<2x128xi32>
      %66 = arith.addi %65, %62 : vector<2x128xi32>
      %c128_i32 = arith.constant 128 : i32
      %67 = vector.broadcast %c128_i32 : i32 to vector<2x128xi32>
      %68 = arith.muli %66, %67 : vector<2x128xi32>
      %69 = arith.addi %68, %63 : vector<2x128xi32>
      %c256_i32 = arith.constant 256 : i32
      %70 = vector.broadcast %c256_i32 : i32 to vector<2x128xi32>
      %71 = arith.cmpi slt, %69, %70 : vector<2x128xi32>
      %cst_26 = arith.constant 0.000000e+00 : f32
      %72 = vector.broadcast %cst_26 : f32 to vector<2x128xf32>
      %73 = arith.select %71, %55, %72 : vector<2x128xi1>, vector<2x128xf32>
      %c0_27 = arith.constant 0 : index
      %c0_28 = arith.constant 0 : index
      %c0_29 = arith.constant 0 : index
      %74 = vector.load %arg4[%c0_27, %c0_28, %c0_29] : memref<1x8x128xf32, #tpu.memory_space<vmem>>, vector<1x1x128xf32>
      %75 = vector.shape_cast %74 : vector<1x1x128xf32> to vector<1x128xf32>
      %cst_30 = arith.constant dense<0.000000e+00> : vector<128xf32>
      %76 = vector.multi_reduction <add>, %73, %cst_30 [0] : vector<2x128xf32> to vector<128xf32>
      %77 = vector.shape_cast %76 : vector<128xf32> to vector<1x128xf32>
      %78 = arith.addf %75, %77 : vector<1x128xf32>
      %c0_31 = arith.constant 0 : index
      %c0_32 = arith.constant 0 : index
      %c0_33 = arith.constant 0 : index
      %79 = vector.load %arg4[%c0_31, %c0_32, %c0_33] : memref<1x8x128xf32, #tpu.memory_space<vmem>>, vector<1x1x128xf32>
      %80 = vector.shape_cast %79 : vector<1x1x128xf32> to vector<1x128xf32>
      %81 = vector.shape_cast %78 : vector<1x128xf32> to vector<1x1x128xf32>
      tpu.vector_store %arg4[%c0_31, %c0_32, %c0_33], %81 {strides = array<i32>} : memref<1x8x128xf32, #tpu.memory_space<vmem>>, vector<1x1x128xf32>,
    } else {
    }
    return
  }
  func.func @transform_0(%arg0: i32, %arg1: i32) -> (i32, i32, i32) {
    %c1_i32 = arith.constant 1 : i32
    %0 = arith.muli %arg0, %c1_i32 : i32
    %1 = arith.addi %0, %arg1 : i32
    %c0_i32 = arith.constant 0 : i32
    %2 = arith.minsi %1, %c0_i32 : i32
    %c0_i32_0 = arith.constant 0 : i32
    %c0_i32_1 = arith.constant 0 : i32
    %c0_i32_2 = arith.constant 0 : i32
    return %c0_i32_0, %2, %c0_i32_1 : i32, i32, i32
  }
  func.func @transform_1(%arg0: i32, %arg1: i32) -> (i32, i32, i32) {
    %c1_i32 = arith.constant 1 : i32
    %0 = arith.muli %arg0, %c1_i32 : i32
    %1 = arith.addi %0, %arg1 : i32
    %c0_i32 = arith.constant 0 : i32
    %2 = arith.minsi %1, %c0_i32 : i32
    %c0_i32_0 = arith.constant 0 : i32
    %c0_i32_1 = arith.constant 0 : i32
    %c0_i32_2 = arith.constant 0 : i32
    return %c0_i32_0, %2, %c0_i32_1 : i32, i32, i32
  }
  func.func @transform_2(%arg0: i32, %arg1: i32) -> (i32, i32, i32) {
    %c0_i32 = arith.constant 0 : i32
    %c0_i32_0 = arith.constant 0 : i32
    %c0_i32_1 = arith.constant 0 : i32
    return %arg0, %c0_i32, %c0_i32_0 : i32, i32, i32
  }
}

</mosaic_0001>

<llo_original>
// kernel: tpu_custom_call.1
$region0: #{tpu_custom_call.1}
  #allocation0 [shape = 'u32[]', space=smem, size = 0x4, offset = 0x4, fixed_abs, tag = 'smem constant byte address 0x4 - core index']
  #allocation1 [shape = 'u32[144,128]{1,0:T(1,128)}', space=vmem, size = 0x12000, scoped, tag = 'internal scratch']
  %s0 = inlined_call_operand.hbm [shape: f32[4,2,128], index: 0, kind: input, shape index: {}]
  %s1 = inlined_call_operand.hbm [shape: f32[4,2,128], index: 1, kind: input, shape index: {}]
  %s2 = inlined_call_operand.hbm [shape: f32[1,8,128], index: 2, kind: output, shape index: {}]
  %s3 = sld [smem:[#allocation0]]
  $region38: #{tpu_custom_call.1} parent=0
    _
  %s5 = ssub.s32 1, %s3
  %s6 = scalar_select 0, %s5, %s3
  $region1: #{tpu_custom_call.1} parent=0
    #allocation2 [shape = 'u8[4096]{0}', space=vmem, size = 0x1000, scoped, tag = 'input window, operand 0, single buffered']
    #allocation3 [shape = 's32[1]{0}', space=sflag, size = 0x4, scoped, tag = 'scoped memory for tpu_custom_call.1']
    #allocation4 [shape = 's32[1]{0}', space=sflag, size = 0x4, scoped, tag = 'scoped memory for tpu_custom_call.1']
    #allocation5 [shape = 'u8[4096]{0}', space=vmem, size = 0x1000, scoped, tag = 'input window, operand 1, single buffered']
    #allocation6 [shape = 's32[1]{0}', space=sflag, size = 0x4, scoped, tag = 'scoped memory for tpu_custom_call.1']
    #allocation7 [shape = 'u8[4096]{0}', space=vmem, size = 0x1000, scoped, tag = 'output window, operand 0, single buffered']
    %7 = vsyncpa [#allocation3], 0
    %8 = vsyncpa [#allocation6], 0
    %9 = vsyncpa [#allocation4], 0
    // Predicated region
    $region2: #{tpu_custom_call.1} parent=1 // pred_check
      _
    $region3: #{tpu_custom_call.1} parent=1 // pred_check_branch
      %11 = sbr.rel (0) target = $region5
    $region4: #{tpu_custom_call.1} parent=1 // pred_region
      %s12 = sadd.s32 0, 0
      %p13 = scmp.lt.s32.totalorder %s12, 0
      %s14 = scalar_select %p13, %s12, 0
      %s16 = ssub.s32 128, 128
      %17 = vsyncadd [#allocation3], %s16
      %s18 = smul.addr %s14, 32
      %s19 = scalar_lea.hbm %s0, %s18
      %s20 = sshll.u32 [#allocation2], 4
      %s21 = int_to_ptr.vmem [resolvable:$true] %s20
      %26 = dma.hbm_to_vmem [thread:$0]  %s19, 128, %s21, [#allocation3], 32, 32, 2
    $region5: #{tpu_custom_call.1} parent=1 // pred_fallthru
      _
    // Predicated region
    $region6: #{tpu_custom_call.1} parent=1 // pred_check
      _
    $region7: #{tpu_custom_call.1} parent=1 // pred_check_branch
      %28 = sbr.rel (0) target = $region9
    $region8: #{tpu_custom_call.1} parent=1 // pred_region
      %s29 = sadd.s32 0, 0
      %p30 = scmp.lt.s32.totalorder %s29, 0
      %s31 = scalar_select %p30, %s29, 0
      %s33 = ssub.s32 128, 128
      %34 = vsyncadd [#allocation6], %s33
      %s35 = smul.addr %s31, 32
      %s36 = scalar_lea.hbm %s1, %s35
      %s37 = sshll.u32 [#allocation5], 4
      %s38 = int_to_ptr.vmem [resolvable:$true] %s37
      %43 = dma.hbm_to_vmem [thread:$0]  %s36, 128, %s38, [#allocation6], 32, 32, 2
    $region9: #{tpu_custom_call.1} parent=1 // pred_fallthru
      _
    // Predicated region
    $region10: #{tpu_custom_call.1} parent=1 // pred_check
      _
    $region11: #{tpu_custom_call.1} parent=1 // pred_check_branch
      %45 = sbr.rel (0) target = $region13
    $region12: #{tpu_custom_call.1} parent=1 // pred_region
      %46 = dma.done [#allocation3], 128
    $region13: #{tpu_custom_call.1} parent=1 // pred_fallthru
      _
    // Predicated region
    $region14: #{tpu_custom_call.1} parent=1 // pred_check
      _
    $region15: #{tpu_custom_call.1} parent=1 // pred_check_branch
      %48 = sbr.rel (0) target = $region17
    $region16: #{tpu_custom_call.1} parent=1 // pred_region
      %49 = dma.done [#allocation6], 128
    $region17: #{tpu_custom_call.1} parent=1 // pred_fallthru
      _
    %s50 = sadd.s32 0, 0
    %p51 = scmp.lt.s32.totalorder %s50, 0
    %s52 = scalar_select %p51, %s50, 0
    %s53 = sadd.s32 0, 0
    %p54 = scmp.lt.s32.totalorder %s53, 0
    %s55 = scalar_select %p54, %s53, 0
    %s56 = sadd.s32 0, 0
    %p57 = scmp.eq.s32.totalorder 0, 0
    // Predicated region
    $region18: #{tpu_custom_call.1} parent=1 // pred_check
      %p58 = pneg %p57
    $region19: #{tpu_custom_call.1} parent=1 // pred_check_branch
      %60 = sbr.rel (%p58) target = $region21
    $region20: #{tpu_custom_call.1} parent=1 // pred_region
      %61 = vst [vmem:[#allocation7] sm:$0xff] 0.0
    $region21: #{tpu_custom_call.1} parent=1 // pred_fallthru
      _
    %v62 = vld [vmem:[#allocation2] sm:$0x3]
    %v63 = vld [vmem:[#allocation2 + $0x2] sm:$0x3]
    %v64 = vld [vmem:[#allocation2 + $0x4] sm:$0x3]
    %v65 = vld [vmem:[#allocation2 + $0x6] sm:$0x3]
    %v66 = vld [vmem:[#allocation5] sm:$0x3]
    %v67 = vld [vmem:[#allocation5 + $0x2] sm:$0x3]
    %v68 = vld [vmem:[#allocation5 + $0x4] sm:$0x3]
    %v69 = vld [vmem:[#allocation5 + $0x6] sm:$0x3]
    %v70 = vmul.f32 %v62, %v66
    %v71 = vmul.f32 %v63, %v67
    %v72 = vmul.f32 %v64, %v68
    %v73 = vmul.f32 %v65, %v69
    %vm74 = vcmask 1041408
    %v75 = vsel %vm74, %v70, 0.0
    %v76 = vsel %vm74, %v71, 0.0
    %v77 = vadd.f32 %v75, %v76
    %v78 = vsel %vm74, %v72, 0.0
    %v79 = vadd.f32 %v77, %v78
    %v80 = vsel %vm74, %v73, 0.0
    %v81 = vadd.f32 %v79, %v80
    %v82 = vmul.f32 %v62, %v62
    %v83 = vmul.f32 %v63, %v63
    %v84 = vmul.f32 %v64, %v64
    %v85 = vmul.f32 %v65, %v65
    %v86 = vsel %vm74, %v82, 0.0
    %v87 = vsel %vm74, %v83, 0.0
    %v88 = vadd.f32 %v86, %v87
    %v89 = vsel %vm74, %v84, 0.0
    %v90 = vadd.f32 %v88, %v89
    %v91 = vsel %vm74, %v85, 0.0
    %v92 = vadd.f32 %v90, %v91
    %v93 = vmul.f32 %v66, %v66
    %v94 = vmul.f32 %v67, %v67
    %v95 = vmul.f32 %v68, %v68
    %v96 = vmul.f32 %v69, %v69
    %v97 = vsel %vm74, %v93, 0.0
    %v98 = vsel %vm74, %v94, 0.0
    %v99 = vadd.f32 %v97, %v98
    %v100 = vsel %vm74, %v95, 0.0
    %v101 = vadd.f32 %v99, %v100
    %v102 = vsel %vm74, %v96, 0.0
    %v103 = vadd.f32 %v101, %v102
    %v104 = vrsqrt.pop %v92
    %v105 = vmul.f32 %v92, %v104
    %vm106 = vcmp.eq.f32.partialorder %v92, inf
    %v107 = vsel %vm106, %v92, %v105
    %vm108 = vcmp.eq.f32.partialorder %v92, 0.0
    %v109 = vand.u32 %v92, 2147483648
    %v110 = vsel %vm108, %v109, %v107
    %v111 = vmax.f32 %v110, 1e-12
    %v112 = vrsqrt.pop %v103
    %v113 = vmul.f32 %v103, %v112
    %vm114 = vcmp.eq.f32.partialorder %v103, inf
    %v115 = vsel %vm114, %v103, %v113
    %vm116 = vcmp.eq.f32.partialorder %v103, 0.0
    %v117 = vand.u32 %v103, 2147483648
    %v118 = vsel %vm116, %v117, %v115
    %v119 = vmax.f32 %v118, 1e-12
    %v120 = vmul.f32 %v111, %v119
    %v121 = vrcp.pop %v120
    %v122 = vmul.f32 %v81, %v121
    %v123 = vand.u32 2147483647, %v122
    %v124 = vmul.f32 %v123, -0.0012624911
    %v125 = vadd.f32 %v124, 0.00667009
    %v126 = vmul.f32 %v125, %v123
    %v127 = vadd.f32 %v126, -0.017088126
    %v128 = vmul.f32 %v127, %v123
    %v129 = vadd.f32 %v128, 0.03089188
    %v130 = vmul.f32 %v129, %v123
    %v131 = vadd.f32 %v130, -0.050174303
    %v132 = vmul.f32 %v131, %v123
    %v133 = vadd.f32 %v132, 0.08897899
    %v134 = vmul.f32 %v133, %v123
    %v135 = vadd.f32 %v134, -0.2145988
    %v136 = vmul.f32 %v135, %v123
    %v137 = vadd.f32 %v136, 1.5707963
    %v138 = vsub.f32 1.0, %v123
    %v139 = vrsqrt.pop %v138
    %v140 = vmul.f32 %v138, %v139
    %vm141 = vcmp.eq.f32.partialorder %v138, inf
    %v142 = vsel %vm141, %v138, %v140
    %vm143 = vcmp.eq.f32.partialorder %v138, 0.0
    %v144 = vand.u32 %v138, 2147483648
    %v145 = vsel %vm143, %v144, %v142
    %v146 = vmul.f32 %v145, %v137
    %vm147 = vcmp.lt.f32.partialorder %v122, 0.0
    %v148 = vsub.f32 3.1415927, %v146
    %v149 = vsel %vm147, %v148, %v146
    %vm150 = vcmp.ne.f32.partialorder %v149, %v149
    %v151 = vsel %vm150, 0.0, %v149
    %p152 = scmp.lt.s32.totalorder %s56, 0
    // Predicated region
    $region22: #{tpu_custom_call.1} parent=1 // pred_check
      %p153 = pneg %p152
    $region23: #{tpu_custom_call.1} parent=1 // pred_check_branch
      %155 = sbr.rel (%p153) target = $region25
    $region24: #{tpu_custom_call.1} parent=1 // pred_region
      %v156 = vld [vmem:[#allocation7] sm:$0x1]
      %v157 = vsel %vm74, %v151, 0.0
      %v158 = vrot.slane %v157, 4
      %v159 = vadd.f32 %v157, %v158
      %v160 = vrot.slane %v159, 2
      %v161 = vadd.f32 %v159, %v160
      %v162 = vrot.slane %v161, 1
      %v163 = vadd.f32 %v161, %v162
      %v164 = vadd.f32 %v156, %v163
      %165 = vst [vmem:[#allocation7] sm:$0x1] %v164
    $region25: #{tpu_custom_call.1} parent=1 // pred_fallthru
      _
    %p166 = scmp.ge.s32.totalorder %s56, 0
    // Predicated region
    $region26: #{tpu_custom_call.1} parent=1 // pred_check
      %p167 = pneg %p166
    $region27: #{tpu_custom_call.1} parent=1 // pred_check_branch
      %169 = sbr.rel (%p167) target = $region29
    $region28: #{tpu_custom_call.1} parent=1 // pred_region
      %v170 = vlaneseq
      %v171 = vshrl.u32 %v170, 7
      %v172 = vlaneseq
      %v173 = vand.u32 %v172, 127
      %s174 = smul.u32 %s56, 2
      %v175 = vstv %s174
      %v176 = vadd.s32 %v175, %v171
      %v177 = vmul.u32 %v176, 128
      %v178 = vadd.s32 %v177, %v173
      %vm179 = vcmp.lt.s32.totalorder %v178, 256
      %v180 = vsel %vm179, %v151, 0.0
      %v181 = vld [vmem:[#allocation7] sm:$0x1]
      %v182 = vsel %vm74, %v180, 0.0
      %v183 = vrot.slane %v182, 4
      %v184 = vadd.f32 %v182, %v183
      %v185 = vrot.slane %v184, 2
      %v186 = vadd.f32 %v184, %v185
      %v187 = vrot.slane %v186, 1
      %v188 = vadd.f32 %v186, %v187
      %v189 = vadd.f32 %v181, %v188
      %190 = vst [vmem:[#allocation7] sm:$0x1] %v189
    $region29: #{tpu_custom_call.1} parent=1 // pred_fallthru
      _
    // Predicated region
    $region30: #{tpu_custom_call.1} parent=1 // pred_check
      _
    $region31: #{tpu_custom_call.1} parent=1 // pred_check_branch
      %192 = sbr.rel (0) target = $region33
    $region32: #{tpu_custom_call.1} parent=1 // pred_region
      %s194 = ssub.s32 128, 128
      %195 = vsyncadd [#allocation4], %s194
      %s197 = sshll.u32 [#allocation7], 4
      %s198 = int_to_ptr.vmem [resolvable:$true] %s197
      %200 = dma.vmem_to_hbm [thread:$0]  %s198, 128, %s2, [#allocation4]
    $region33: #{tpu_custom_call.1} parent=1 // pred_fallthru
      _
    // Predicated region
    $region34: #{tpu_custom_call.1} parent=1 // pred_check
      _
    $region35: #{tpu_custom_call.1} parent=1 // pred_check_branch
      %202 = sbr.rel (0) target = $region37
    $region36: #{tpu_custom_call.1} parent=1 // pred_region
      %203 = dma.done [#allocation4], 128
    $region37: #{tpu_custom_call.1} parent=1 // pred_fallthru
      _
    %204 = vsyncpa [#allocation3], 1
    %205 = vsyncpa [#allocation6], 1
    %206 = vsyncpa [#allocation4], 1

</llo_original>
